<compile_context>
chip_gen: v7x
topology: tpu7x:2x2x1
jax: 0.10.0
libtpu: 0.0.40
codegen_flags: <defaults>
</compile_context>

<pallas_src>
import functools

import jax
import jax.numpy as jnp
from jax.experimental import pallas as pl
from jax.experimental.pallas import tpu as pltpu

LANES = 128
_MAX_TILE_ROWS = 2048  # (2048, 128) f32 tile = 1 MiB


def _plan_tiling(hw):
    """Choose (padded_rows, tile_rows, num_tiles) for lane-dense tiling."""
    s_raw = max(1, -(-hw // LANES))          # ceil(hw / 128) rows of 128 lanes
    num_t = -(-s_raw // _MAX_TILE_ROWS)      # number of row-tiles
    tile_s = -(-s_raw // num_t)              # balanced tile size
    tile_s = -(-tile_s // 8) * 8             # round up to a sublane multiple
    return num_t * tile_s, tile_s, num_t


def _rowsum8(x):
    """(R, 128) -> (8, 128): tree-add groups of 8 sublane rows (vreg adds)."""
    r = x.shape[0]
    return x.reshape(r // 8, 8, LANES).sum(axis=0)


def _focal_loss_kernel(pred_ref, gt_ref, loss_ref, npos_ref,
                       pos_scr, negf_scr, *, pos_pred_weight):
    t = pl.program_id(1)
    c = pl.program_id(2)

    @pl.when((t == 0) & (c == 0))
    def _init():
        loss_ref[...] = jnp.zeros_like(loss_ref)
        npos_ref[...] = jnp.zeros_like(npos_ref)

    # gt-derived terms depend only on (b, t): compute once per tile (first
    # channel step), stash in VMEM scratch, reuse for the remaining channels.
    @pl.when(c == 0)
    def _gt_prep():
        gt = gt_ref[...].astype(jnp.float32)
        pos_inds = (gt == 1.0).astype(jnp.float32)
        neg_factor = (gt < 1.0).astype(jnp.float32) * (1.0 - gt) ** 4
        pos_scr[...] = pos_inds
        negf_scr[...] = neg_factor
        # num_pos counts gt positives ONCE (not once per channel).
        npos_ref[...] += _rowsum8(pos_inds)

    pred = pred_ref[...].astype(jnp.float32)
    is_pos = pos_scr[...] == 1.0
    neg_factor = negf_scr[...]          # neg_inds * (1 - gt)^4  (0 on padding)

    # torch.where(pred > 0.5, pos_pred_weight, 1) on the *unclamped* pred.
    w = jnp.where(pred > 0.5, jnp.float32(pos_pred_weight), jnp.float32(1.0))
    p = jnp.clip(pred, 0.0001, 1.0 - 0.0001)

    # Each element is exclusively positive or negative -> single log and a
    # single fused (pos + neg) contribution per element.
    logx = jnp.log(jnp.where(is_pos, p, 1.0 - p))
    factor = jnp.where(is_pos, (1.0 - p) ** 2, p * p * neg_factor)
    loss_ref[...] += _rowsum8(logx * w * factor)


def modified_focal_loss(pred, gt, pos_pred_weight=2):
    """pred: (B, C, H, W), gt: (B, H, W) -> scalar loss (float32)."""
    B, C, H, W = pred.shape
    hw = H * W
    s, tile_s, num_t = _plan_tiling(hw)
    pad = s * LANES - hw

    pred3 = pred.reshape(B, C, hw)
    gt2 = gt.reshape(B, hw)
    if pad:
        # Padded elements use gt = 2.0: pos_inds == 0 and neg_factor == 0, so
        # they contribute exactly zero to the loss and to num_pos.
        pred3 = jnp.pad(pred3, ((0, 0), (0, 0), (0, pad)), constant_values=0.5)
        gt2 = jnp.pad(gt2, ((0, 0), (0, pad)), constant_values=2.0)

    pred4 = pred3.reshape(B, C, s, LANES)   # lane-dense; gt never broadcast to C
    gt3 = gt2.reshape(B, s, LANES)

    kernel = functools.partial(_focal_loss_kernel,
                               pos_pred_weight=float(pos_pred_weight))

    loss_part, npos_part = pl.pallas_call(
        kernel,
        out_shape=(jax.ShapeDtypeStruct((B, 8, LANES), jnp.float32),
                   jax.ShapeDtypeStruct((B, 8, LANES), jnp.float32)),
        grid_spec=pltpu.PrefetchScalarGridSpec(
            num_scalar_prefetch=0,
            # C innermost: the gt block index is unchanged across the C loop so
            # it is not re-fetched.  B outermost and "parallel": each batch row
            # owns its own partial-output block, so megacore sharding is safe.
            grid=(B, num_t, C),
            in_specs=[
                pl.BlockSpec((None, None, tile_s, LANES),
                             lambda b, t, c: (b, c, t, 0)),
                pl.BlockSpec((None, tile_s, LANES),
                             lambda b, t, c: (b, t, 0)),
            ],
            out_specs=[
                pl.BlockSpec((None, 8, LANES), lambda b, t, c: (b, 0, 0)),
                pl.BlockSpec((None, 8, LANES), lambda b, t, c: (b, 0, 0)),
            ],
            scratch_shapes=[
                pltpu.VMEM((tile_s, LANES), jnp.float32),   # pos_inds
                pltpu.VMEM((tile_s, LANES), jnp.float32),   # neg_inds*(1-gt)^4
            ],
        ),
        compiler_params=pltpu.CompilerParams(
            dimension_semantics=("parallel", "arbitrary", "arbitrary"),
            vmem_limit_bytes=32 * 1024 * 1024),
    )(pred4, gt3)

    loss_total = jnp.sum(loss_part)      # == pos_loss + neg_loss
    num_pos = jnp.sum(npos_part)
    denom = jnp.where(num_pos == 0, jnp.float32(1.0), num_pos)
    # When num_pos == 0 there are no positive terms, so loss_total == neg_loss.
    return jnp.where(num_pos == 0, -loss_total, -loss_total / denom)


def _reference(pred, gt, pos_pred_weight=2):
    """Pure-JAX transcription of the torch forward pass (for verification)."""
    pred = pred.astype(jnp.float32)
    gt = gt.astype(jnp.float32)[:, None, :, :]
    pos_inds = (gt == 1.0).astype(jnp.float32)
    neg_inds = (gt < 1.0).astype(jnp.float32)
    w = jnp.where(pred > 0.5, float(pos_pred_weight), 1.0)
    neg_weights = (1.0 - gt) ** 4
    p = jnp.clip(pred, 0.0001, 1.0 - 0.0001)
    pos_loss = (jnp.log(p) * (1.0 - p) ** 2 * pos_inds * w).sum()
    neg_loss = (jnp.log(1.0 - p) * p ** 2 * neg_weights * neg_inds * w).sum()
    num_pos = pos_inds.sum()  # counts (B,1,H,W) positives: once, not per C
    denom = jnp.where(num_pos == 0, 1.0, num_pos)
    return jnp.where(num_pos == 0, -neg_loss,
                     -(pos_loss + neg_loss) / denom)


if __name__ == "__main__":
    B, C, H, W = 2, 4, 16, 16
    key = jax.random.PRNGKey(0)
    k_pred, k_gt, k_pos = jax.random.split(key, 3)

    pred = jax.random.uniform(k_pred, (B, C, H, W), jnp.float32,
                              minval=0.01, maxval=0.99)
    gt_soft = jax.random.uniform(k_gt, (B, H, W), jnp.float32,
                                 minval=0.0, maxval=0.95)
    # Sprinkle exact 1.0 positives into the ground-truth heatmap.
    gt = jnp.where(jax.random.uniform(k_pos, (B, H, W)) < 0.05,
                   jnp.float32(1.0), gt_soft)

    loss = modified_focal_loss(pred, gt, pos_pred_weight=2)
    loss = jax.block_until_ready(loss)

    ref = jax.block_until_ready(_reference(pred, gt, pos_pred_weight=2))
    assert jnp.allclose(loss, ref, rtol=1e-4, atol=1e-4), (loss, ref)

    print("KERNEL_OK")
</pallas_src>

<mosaic_0001>
module attributes {stable_mosaic.version = 11 : i64} {
  func.func @_focal_loss_kernel(%arg0: i32, %arg1: i32, %arg2: i32, %arg3: memref<1x1x8x128xf32, #tpu.memory_space<vmem>>, %arg4: memref<1x8x128xf32, #tpu.memory_space<vmem>>, %arg5: memref<1x8x128xf32, #tpu.memory_space<vmem>>, %arg6: memref<1x8x128xf32, #tpu.memory_space<vmem>>, %arg7: memref<8x128xf32, #tpu.memory_space<vmem>>, %arg8: memref<8x128xf32, #tpu.memory_space<vmem>>) attributes {dimension_semantics = [#tpu.dimension_semantics<parallel>, #tpu.dimension_semantics<arbitrary>, #tpu.dimension_semantics<arbitrary>], iteration_bounds = array<i64: 2, 1, 4>, scalar_prefetch = 0 : i64, scratch_operands = 2 : i64, tpu.core_type = #tpu.core_type<tc>, window_params = [{transform_indices = @transform_0, window_bounds = array<i64: 1, 1, 8, 128>}, {transform_indices = @transform_1, window_bounds = array<i64: 1, 8, 128>}, {transform_indices = @transform_2, window_bounds = array<i64: 1, 8, 128>}, {transform_indices = @transform_3, window_bounds = array<i64: 1, 8, 128>}]} {
    %c0_i32 = arith.constant 0 : i32
    %0 = arith.cmpi eq, %arg1, %c0_i32 : i32
    %c0_i32_0 = arith.constant 0 : i32
    %1 = arith.cmpi eq, %arg2, %c0_i32_0 : i32
    %2 = arith.andi %0, %1 : i1
    %3 = arith.extui %2 : i1 to i32
    %c0_i32_1 = arith.constant 0 : i32
    %4 = arith.cmpi ne, %3, %c0_i32_1 : i32
    scf.if %4 {
      %cst_25 = arith.constant 0.000000e+00 : f32
      %43 = vector.broadcast %cst_25 : f32 to vector<8x128xf32>
      %c0_26 = arith.constant 0 : index
      %c0_27 = arith.constant 0 : index
      %c0_28 = arith.constant 0 : index
      %44 = vector.load %arg5[%c0_26, %c0_27, %c0_28] : memref<1x8x128xf32, #tpu.memory_space<vmem>>, vector<1x8x128xf32>
      %45 = vector.shape_cast %44 : vector<1x8x128xf32> to vector<8x128xf32>
      %46 = vector.shape_cast %43 : vector<8x128xf32> to vector<1x8x128xf32>
      tpu.vector_store %arg5[%c0_26, %c0_27, %c0_28], %46 {strides = array<i32>} : memref<1x8x128xf32, #tpu.memory_space<vmem>>, vector<1x8x128xf32>,
      %cst_29 = arith.constant 0.000000e+00 : f32
      %47 = vector.broadcast %cst_29 : f32 to vector<8x128xf32>
      %c0_30 = arith.constant 0 : index
      %c0_31 = arith.constant 0 : index
      %c0_32 = arith.constant 0 : index
      %48 = vector.load %arg6[%c0_30, %c0_31, %c0_32] : memref<1x8x128xf32, #tpu.memory_space<vmem>>, vector<1x8x128xf32>
      %49 = vector.shape_cast %48 : vector<1x8x128xf32> to vector<8x128xf32>
      %50 = vector.shape_cast %47 : vector<8x128xf32> to vector<1x8x128xf32>
      tpu.vector_store %arg6[%c0_30, %c0_31, %c0_32], %50 {strides = array<i32>} : memref<1x8x128xf32, #tpu.memory_space<vmem>>, vector<1x8x128xf32>,
    } else {
    }
    %c0_i32_2 = arith.constant 0 : i32
    %5 = arith.cmpi eq, %arg2, %c0_i32_2 : i32
    %6 = arith.extui %5 : i1 to i32
    %c0_i32_3 = arith.constant 0 : i32
    %7 = arith.cmpi ne, %6, %c0_i32_3 : i32
    scf.if %7 {
      %c0_25 = arith.constant 0 : index
      %c0_26 = arith.constant 0 : index
      %c0_27 = arith.constant 0 : index
      %43 = vector.load %arg4[%c0_25, %c0_26, %c0_27] : memref<1x8x128xf32, #tpu.memory_space<vmem>>, vector<1x8x128xf32>
      %44 = vector.shape_cast %43 : vector<1x8x128xf32> to vector<8x128xf32>
      %cst_28 = arith.constant 1.000000e+00 : f32
      %45 = vector.broadcast %cst_28 : f32 to vector<8x128xf32>
      %46 = arith.cmpf oeq, %44, %45 : vector<8x128xf32>
      %47 = arith.extui %46 : vector<8x128xi1> to vector<8x128xi32>
      %48 = arith.sitofp %47 : vector<8x128xi32> to vector<8x128xf32>
      %cst_29 = arith.constant 1.000000e+00 : f32
      %49 = vector.broadcast %cst_29 : f32 to vector<8x128xf32>
      %50 = arith.cmpf olt, %44, %49 : vector<8x128xf32>
      %51 = arith.extui %50 : vector<8x128xi1> to vector<8x128xi32>
      %52 = arith.sitofp %51 : vector<8x128xi32> to vector<8x128xf32>
      %cst_30 = arith.constant 1.000000e+00 : f32
      %53 = vector.broadcast %cst_30 : f32 to vector<8x128xf32>
      %54 = arith.subf %53, %44 : vector<8x128xf32>
      %55 = arith.mulf %54, %54 : vector<8x128xf32>
      %56 = arith.mulf %55, %55 : vector<8x128xf32>
      %57 = arith.mulf %52, %56 : vector<8x128xf32>
      %c0_31 = arith.constant 0 : index
      %c0_32 = arith.constant 0 : index
      %58 = vector.load %arg7[%c0_31, %c0_32] : memref<8x128xf32, #tpu.memory_space<vmem>>, vector<8x128xf32>
      tpu.vector_store %arg7[%c0_31, %c0_32], %48 {strides = array<i32>} : memref<8x128xf32, #tpu.memory_space<vmem>>, vector<8x128xf32>,
      %c0_33 = arith.constant 0 : index
      %c0_34 = arith.constant 0 : index
      %59 = vector.load %arg8[%c0_33, %c0_34] : memref<8x128xf32, #tpu.memory_space<vmem>>, vector<8x128xf32>
      tpu.vector_store %arg8[%c0_33, %c0_34], %57 {strides = array<i32>} : memref<8x128xf32, #tpu.memory_space<vmem>>, vector<8x128xf32>,
      %c0_35 = arith.constant 0 : index
      %c0_36 = arith.constant 0 : index
      %c0_37 = arith.constant 0 : index
      %60 = vector.load %arg6[%c0_35, %c0_36, %c0_37] : memref<1x8x128xf32, #tpu.memory_space<vmem>>, vector<1x8x128xf32>
      %61 = vector.shape_cast %60 : vector<1x8x128xf32> to vector<8x128xf32>
      %62 = vector.shape_cast %48 : vector<8x128xf32> to vector<1x8x128xf32>
      %cst_38 = arith.constant dense<0.000000e+00> : vector<8x128xf32>
      %63 = vector.multi_reduction <add>, %62, %cst_38 [0] : vector<1x8x128xf32> to vector<8x128xf32>
      %64 = arith.addf %61, %63 : vector<8x128xf32>
      %c0_39 = arith.constant 0 : index
      %c0_40 = arith.constant 0 : index
      %c0_41 = arith.constant 0 : index
      %65 = vector.load %arg6[%c0_39, %c0_40, %c0_41] : memref<1x8x128xf32, #tpu.memory_space<vmem>>, vector<1x8x128xf32>
      %66 = vector.shape_cast %65 : vector<1x8x128xf32> to vector<8x128xf32>
      %67 = vector.shape_cast %64 : vector<8x128xf32> to vector<1x8x128xf32>
      tpu.vector_store %arg6[%c0_39, %c0_40, %c0_41], %67 {strides = array<i32>} : memref<1x8x128xf32, #tpu.memory_space<vmem>>, vector<1x8x128xf32>,
    } else {
    }
    %c0 = arith.constant 0 : index
    %c0_4 = arith.constant 0 : index
    %c0_5 = arith.constant 0 : index
    %c0_6 = arith.constant 0 : index
    %8 = vector.load %arg3[%c0, %c0_4, %c0_5, %c0_6] : memref<1x1x8x128xf32, #tpu.memory_space<vmem>>, vector<1x1x8x128xf32>
    %9 = vector.shape_cast %8 : vector<1x1x8x128xf32> to vector<8x128xf32>
    %c0_7 = arith.constant 0 : index
    %c0_8 = arith.constant 0 : index
    %10 = vector.load %arg7[%c0_7, %c0_8] : memref<8x128xf32, #tpu.memory_space<vmem>>, vector<8x128xf32>
    %cst = arith.constant 1.000000e+00 : f32
    %11 = vector.broadcast %cst : f32 to vector<8x128xf32>
    %12 = arith.cmpf oeq, %10, %11 : vector<8x128xf32>
    %c0_9 = arith.constant 0 : index
    %c0_10 = arith.constant 0 : index
    %13 = vector.load %arg8[%c0_9, %c0_10] : memref<8x128xf32, #tpu.memory_space<vmem>>, vector<8x128xf32>
    %cst_11 = arith.constant 5.000000e-01 : f32
    %14 = vector.broadcast %cst_11 : f32 to vector<8x128xf32>
    %15 = arith.cmpf ogt, %9, %14 : vector<8x128xf32>
    %cst_12 = arith.constant 2.000000e+00 : f32
    %cst_13 = arith.constant 1.000000e+00 : f32
    %16 = vector.broadcast %cst_12 : f32 to vector<8x128xf32>
    %17 = vector.broadcast %cst_13 : f32 to vector<8x128xf32>
    %18 = arith.select %15, %16, %17 : vector<8x128xi1>, vector<8x128xf32>
    %cst_14 = arith.constant 9.99999974E-5 : f32
    %cst_15 = arith.constant 0.999899983 : f32
    %19 = vector.broadcast %cst_14 : f32 to vector<8x128xf32>
    %20 = arith.maximumf %19, %9 : vector<8x128xf32>
    %21 = vector.broadcast %cst_15 : f32 to vector<8x128xf32>
    %22 = arith.minimumf %21, %20 : vector<8x128xf32>
    %cst_16 = arith.constant 1.000000e+00 : f32
    %23 = vector.broadcast %cst_16 : f32 to vector<8x128xf32>
    %24 = arith.subf %23, %22 : vector<8x128xf32>
    %25 = arith.select %12, %22, %24 : vector<8x128xi1>, vector<8x128xf32>
    %26 = math.log %25 : vector<8x128xf32>
    %cst_17 = arith.constant 1.000000e+00 : f32
    %27 = vector.broadcast %cst_17 : f32 to vector<8x128xf32>
    %28 = arith.subf %27, %22 : vector<8x128xf32>
    %29 = arith.mulf %28, %28 : vector<8x128xf32>
    %30 = arith.mulf %22, %22 : vector<8x128xf32>
    %31 = arith.mulf %30, %13 : vector<8x128xf32>
    %32 = arith.select %12, %29, %31 : vector<8x128xi1>, vector<8x128xf32>
    %c0_18 = arith.constant 0 : index
    %c0_19 = arith.constant 0 : index
    %c0_20 = arith.constant 0 : index
    %33 = vector.load %arg5[%c0_18, %c0_19, %c0_20] : memref<1x8x128xf32, #tpu.memory_space<vmem>>, vector<1x8x128xf32>
    %34 = vector.shape_cast %33 : vector<1x8x128xf32> to vector<8x128xf32>
    %35 = arith.mulf %26, %18 : vector<8x128xf32>
    %36 = arith.mulf %35, %32 : vector<8x128xf32>
    %37 = vector.shape_cast %36 : vector<8x128xf32> to vector<1x8x128xf32>
    %cst_21 = arith.constant dense<0.000000e+00> : vector<8x128xf32>
    %38 = vector.multi_reduction <add>, %37, %cst_21 [0] : vector<1x8x128xf32> to vector<8x128xf32>
    %39 = arith.addf %34, %38 : vector<8x128xf32>
    %c0_22 = arith.constant 0 : index
    %c0_23 = arith.constant 0 : index
    %c0_24 = arith.constant 0 : index
    %40 = vector.load %arg5[%c0_22, %c0_23, %c0_24] : memref<1x8x128xf32, #tpu.memory_space<vmem>>, vector<1x8x128xf32>
    %41 = vector.shape_cast %40 : vector<1x8x128xf32> to vector<8x128xf32>
    %42 = vector.shape_cast %39 : vector<8x128xf32> to vector<1x8x128xf32>
    tpu.vector_store %arg5[%c0_22, %c0_23, %c0_24], %42 {strides = array<i32>} : memref<1x8x128xf32, #tpu.memory_space<vmem>>, vector<1x8x128xf32>,
    return
  }
  func.func @transform_0(%arg0: i32, %arg1: i32, %arg2: i32) -> (i32, i32, i32, i32) {
    %c0_i32 = arith.constant 0 : i32
    %c0_i32_0 = arith.constant 0 : i32
    return %arg0, %arg2, %arg1, %c0_i32 : i32, i32, i32, i32
  }
  func.func @transform_1(%arg0: i32, %arg1: i32, %arg2: i32) -> (i32, i32, i32) {
    %c0_i32 = arith.constant 0 : i32
    %c0_i32_0 = arith.constant 0 : i32
    return %arg0, %arg1, %c0_i32 : i32, i32, i32
  }
  func.func @transform_2(%arg0: i32, %arg1: i32, %arg2: i32) -> (i32, i32, i32) {
    %c0_i32 = arith.constant 0 : i32
    %c0_i32_0 = arith.constant 0 : i32
    %c0_i32_1 = arith.constant 0 : i32
    return %arg0, %c0_i32, %c0_i32_0 : i32, i32, i32
  }
  func.func @transform_3(%arg0: i32, %arg1: i32, %arg2: i32) -> (i32, i32, i32) {
    %c0_i32 = arith.constant 0 : i32
    %c0_i32_0 = arith.constant 0 : i32
    %c0_i32_1 = arith.constant 0 : i32
    return %arg0, %c0_i32, %c0_i32_0 : i32, i32, i32
  }
}

</mosaic_0001>

<llo_original>
// kernel: tpu_custom_call.1
$region0: #{tpu_custom_call.1}
  #allocation0 [shape = 'u32[]', space=smem, size = 0x4, offset = 0x4, fixed_abs, tag = 'smem constant byte address 0x4 - core index']
  #allocation1 [shape = 'u32[144,128]{1,0:T(1,128)}', space=vmem, size = 0x12000, scoped, tag = 'internal scratch']
  #allocation2 [shape = 'f32[8,128]{1,0:T(8,128)}', space=vmem, size = 0x1000, scoped, tag = 'scratch operand']
  #allocation3 [shape = 'f32[8,128]{1,0:T(8,128)}', space=vmem, size = 0x1000, scoped, tag = 'scratch operand']
  %s0 = inlined_call_operand.hbm [shape: f32[2,4,8,128], index: 0, kind: input, shape index: {}]
  %s1 = inlined_call_operand.hbm [shape: f32[2,8,128], index: 1, kind: input, shape index: {}]
  %s2 = inlined_call_operand.hbm [shape: f32[2,8,128], index: 2, kind: output, shape index: {0}]
  %s3 = inlined_call_operand.hbm [shape: f32[2,8,128], index: 3, kind: output, shape index: {1}]
  %4 = xla_tuple %s2, %s3
  %s5 = sld [smem:[#allocation0]]
  $region65: #{tpu_custom_call.1} parent=0
    _
  %s7 = ssub.s32 1, %s5
  %s8 = scalar_select 0, %s7, %s5
  $region1: #{tpu_custom_call.1} parent=0
    #allocation4 [shape = 'u8[8192]{0}', space=vmem, size = 0x2000, scoped, tag = 'input window, operand 0']
    #allocation5 [shape = 's32[2]{0}', space=sflag, size = 0x8, scoped, tag = 'scoped memory for tpu_custom_call.1']
    #allocation6 [shape = 's32[2]{0}', space=sflag, size = 0x8, scoped, tag = 'scoped memory for tpu_custom_call.1']
    #allocation7 [shape = 'u8[8192]{0}', space=vmem, size = 0x2000, scoped, tag = 'input window, operand 1']
    #allocation8 [shape = 's32[2]{0}', space=sflag, size = 0x8, scoped, tag = 'scoped memory for tpu_custom_call.1']
    #allocation9 [shape = 'u8[8192]{0}', space=vmem, size = 0x2000, scoped, tag = 'output window, operand 0']
    #allocation10 [shape = 'u8[8192]{0}', space=vmem, size = 0x2000, scoped, tag = 'output window, operand 1']
    #allocation11 [shape = 's32[2]{0}', space=sflag, size = 0x8, scoped, tag = 'scoped memory for tpu_custom_call.1']
    %9 = vsyncpa [#allocation5], 0
    %s10 = scalar_lea.sflag [#allocation5], 1
    %11 = vsyncpa %s10, 0
    %12 = vsyncpa [#allocation8], 0
    %s13 = scalar_lea.sflag [#allocation8], 1
    %14 = vsyncpa %s13, 0
    %15 = vsyncpa [#allocation6], 0
    %s16 = scalar_lea.sflag [#allocation6], 1
    %17 = vsyncpa %s16, 0
    %18 = vsyncpa [#allocation11], 0
    %s19 = scalar_lea.sflag [#allocation11], 1
    %20 = vsyncpa %s19, 0
    loop: start=0, step=1, limit=10
    $region2: #{tpu_custom_call.1} parent=1 // loop_pre_header
      _
    $region3: #{tpu_custom_call.1} parent=1 // loop_header
      %s22 = sphi 0, %s26
      %p23 = scmp.ge.s32.totalorder %s22, 10
      %s29 = sphi 0, %s48
      %s30 = sphi 0, %s44
      %s31 = sphi 0, %s40
      %s32 = sphi 0, %s29
      %s33 = sphi 0, %s30
      %s34 = sphi 0, %s31
      %s35 = sphi 0, %s32
      %s36 = sphi 0, %s33
      %s37 = sphi 0, %s34
      %s55 = sphi 0, %s57
      %s58 = sphi 0, %s55
      %s59 = sphi 0, %s58
      %s75 = sphi 0, %s59
      %s83 = sphi 0, %s85
      %s86 = sphi 0, %s83
      %s87 = sphi 0, %s86
      %s103 = sphi 0, %s87
      %s109 = sphi 0, %s111
      %s112 = sphi 0, %s109
      %s113 = sphi 0, %s112
      %s129 = sphi 0, %s113
      %s135 = sphi 0, %s137
      %s138 = sphi 0, %s135
      %s139 = sphi 0, %s138
      %s155 = sphi 0, %s139
    $region4: #{tpu_custom_call.1} parent=1 // loop_header_branch
      %25 = sbr.rel (%p23) target = $region8
    $region5: #{tpu_custom_call.1} parent=1 // loop_body
      %s27 = ssub.s32 %s22, 1
      %s28 = ssub.s32 %s22, 2
      %s38 = sadd.s32 1, %s31
      %p39 = scmp.ge.s32.totalorder %s38, 4
      %s40 = scalar_select %p39, 0, %s38
      %s41 = sadd.s32 1, %s30
      %s42 = scalar_select %p39, %s41, %s30
      %p43 = scmp.ge.s32.totalorder %s42, 1
      %s44 = scalar_select %p43, 0, %s42
      %s45 = sadd.s32 1, %s29
      %s46 = scalar_select %p43, %s45, %s29
      %p47 = scmp.ge.s32.totalorder %s46, 2
      %s48 = scalar_select %p47, 0, %s46
      %s49 = ssub.s32 %s29, %s48
      %s50 = ssub.s32 %s31, %s40
      %s51 = sor.u32 %s49, %s50
      %s52 = ssub.s32 %s30, %s44
      %s53 = sor.u32 %s51, %s52
      %p54 = scmp.eq.s32.totalorder %s53, 0
      %s56 = sadd.s32 %s55, 1
      %s57 = scalar_select %p54, %s55, %s56
      %p60 = pneg %p54
      %p61 = scmp.eq.s32.totalorder %s22, 7
      %p62 = por %p60, %p61
      %p63 = scmp.ne.s32.totalorder %s55, %s58
      %p64 = scmp.eq.s32.totalorder %s22, 0
      %p65 = por %p63, %p64
      %p66 = scmp.ne.s32.totalorder %s55, %s58
      %p67 = scmp.eq.s32.totalorder %s27, 7
      %p68 = por %p66, %p67
      %p69 = scmp.ne.s32.totalorder %s58, %s59
      %p70 = scmp.eq.s32.totalorder %s27, 0
      %p71 = por %p69, %p70
      %p72 = scmp.ne.s32.totalorder %s58, %s59
      %p73 = scmp.eq.s32.totalorder %s28, 7
      %p74 = por %p72, %p73
      %p76 = scmp.ne.s32.totalorder %s59, %s75
      %p77 = scmp.eq.s32.totalorder %s28, 0
      %p78 = por %p76, %p77
      %s79 = ssub.s32 %s29, %s48
      %s80 = ssub.s32 %s30, %s44
      %s81 = sor.u32 %s79, %s80
      %p82 = scmp.eq.s32.totalorder %s81, 0
      %s84 = sadd.s32 %s83, 1
      %s85 = scalar_select %p82, %s83, %s84
      %p88 = pneg %p82
      %p89 = scmp.eq.s32.totalorder %s22, 7
      %p90 = por %p88, %p89
      %p91 = scmp.ne.s32.totalorder %s83, %s86
      %p92 = scmp.eq.s32.totalorder %s22, 0
      %p93 = por %p91, %p92
      %p94 = scmp.ne.s32.totalorder %s83, %s86
      %p95 = scmp.eq.s32.totalorder %s27, 7
      %p96 = por %p94, %p95
      %p97 = scmp.ne.s32.totalorder %s86, %s87
      %p98 = scmp.eq.s32.totalorder %s27, 0
      %p99 = por %p97, %p98
      %p100 = scmp.ne.s32.totalorder %s86, %s87
      %p101 = scmp.eq.s32.totalorder %s28, 7
      %p102 = por %p100, %p101
      %p104 = scmp.ne.s32.totalorder %s87, %s103
      %p105 = scmp.eq.s32.totalorder %s28, 0
      %p106 = por %p104, %p105
      %s107 = ssub.s32 %s29, %s48
      %p108 = scmp.eq.s32.totalorder %s107, 0
      %s110 = sadd.s32 %s109, 1
      %s111 = scalar_select %p108, %s109, %s110
      %p114 = pneg %p108
      %p115 = scmp.eq.s32.totalorder %s22, 7
      %p116 = por %p114, %p115
      %p117 = scmp.ne.s32.totalorder %s109, %s112
      %p118 = scmp.eq.s32.totalorder %s22, 0
      %p119 = por %p117, %p118
      %p120 = scmp.ne.s32.totalorder %s109, %s112
      %p121 = scmp.eq.s32.totalorder %s27, 7
      %p122 = por %p120, %p121
      %p123 = scmp.ne.s32.totalorder %s112, %s113
      %p124 = scmp.eq.s32.totalorder %s27, 0
      %p125 = por %p123, %p124
      %p126 = scmp.ne.s32.totalorder %s112, %s113
      %p127 = scmp.eq.s32.totalorder %s28, 7
      %p128 = por %p126, %p127
      %p130 = scmp.ne.s32.totalorder %s113, %s129
      %p131 = scmp.eq.s32.totalorder %s28, 0
      %p132 = por %p130, %p131
      %s133 = ssub.s32 %s29, %s48
      %p134 = scmp.eq.s32.totalorder %s133, 0
      %s136 = sadd.s32 %s135, 1
      %s137 = scalar_select %p134, %s135, %s136
      %p140 = pneg %p134
      %p141 = scmp.eq.s32.totalorder %s22, 7
      %p142 = por %p140, %p141
      %p143 = scmp.ne.s32.totalorder %s135, %s138
      %p144 = scmp.eq.s32.totalorder %s22, 0
      %p145 = por %p143, %p144
      %p146 = scmp.ne.s32.totalorder %s135, %s138
      %p147 = scmp.eq.s32.totalorder %s27, 7
      %p148 = por %p146, %p147
      %p149 = scmp.ne.s32.totalorder %s138, %s139
      %p150 = scmp.eq.s32.totalorder %s27, 0
      %p151 = por %p149, %p150
      %p152 = scmp.ne.s32.totalorder %s138, %s139
      %p153 = scmp.eq.s32.totalorder %s28, 7
      %p154 = por %p152, %p153
      %p156 = scmp.ne.s32.totalorder %s139, %s155
      %p157 = scmp.eq.s32.totalorder %s28, 0
      %p158 = por %p156, %p157
      %p159 = scmp.le.s32.totalorder 1, %s22
      %p160 = scmp.lt.s32.totalorder %s22, 9
      %p161 = pnand %p159, %p160
      %p162 = pneg %p161
      // Predicated region
      $region9: #{tpu_custom_call.1} parent=5 // pred_check
        _
      $region10: #{tpu_custom_call.1} parent=5 // pred_check_branch
        %164 = sbr.rel (%p161) target = $region12
      $region11: #{tpu_custom_call.1} parent=5 // pred_region
        %s165 = ssub.s32 %s22, 1
      $region12: #{tpu_custom_call.1} parent=5 // pred_fallthru
        _
      %p166 = scmp.lt.s32.totalorder %s22, 8
      // Predicated region
      $region13: #{tpu_custom_call.1} parent=5 // pred_check
        %p167 = pneg %p166
      $region14: #{tpu_custom_call.1} parent=5 // pred_check_branch
        %169 = sbr.rel (%p167) target = $region16
      $region15: #{tpu_custom_call.1} parent=5 // pred_region
        // Predicated region
        $region17: #{tpu_custom_call.1} parent=15 // pred_check
          %p170 = pneg %p65
        $region18: #{tpu_custom_call.1} parent=15 // pred_check_branch
          %172 = sbr.rel (%p170) target = $region20
        $region19: #{tpu_custom_call.1} parent=15 // pred_region
          %s173 = sand.u32 %s55, 1
          %s174 = scalar_lea.sflag [#allocation5], %s173
          %s175 = sand.u32 %s55, 1
          %s176 = smul.addr %s175, 8
          %s177 = scalar_lea.vmem [#allocation4], %s176
          %s179 = ssub.s32 128, 128
          %180 = vsyncadd %s174, %s179
          %s181 = sadd.s32 %s30, %s31
          %s182 = smul.addr %s29, 4
          %s183 = sadd.s32 %s181, %s182
          %s184 = smul.addr %s183, 128
          %s185 = scalar_lea.hbm %s0, %s184
          %s187 = sshll.u32 %s177, 4
          %s188 = int_to_ptr.vmem [resolvable:$true] %s187
          %190 = dma.hbm_to_vmem [thread:$0]  %s185, 128, %s188, %s174
        $region20: #{tpu_custom_call.1} parent=15 // pred_fallthru
          _
        // Predicated region
        $region21: #{tpu_custom_call.1} parent=15 // pred_check
          %p191 = pneg %p93
        $region22: #{tpu_custom_call.1} parent=15 // pred_check_branch
          %193 = sbr.rel (%p191) target = $region24
        $region23: #{tpu_custom_call.1} parent=15 // pred_region
          %s194 = sand.u32 %s83, 1
          %s195 = scalar_lea.sflag [#allocation8], %s194
          %s196 = sand.u32 %s83, 1
          %s197 = smul.addr %s196, 8
          %s198 = scalar_lea.vmem [#allocation7], %s197
          %s200 = ssub.s32 128, 128
          %201 = vsyncadd %s195, %s200
          %s202 = sadd.s32 %s30, %s29
          %s203 = smul.addr %s202, 128
          %s204 = scalar_lea.hbm %s1, %s203
          %s206 = sshll.u32 %s198, 4
          %s207 = int_to_ptr.vmem [resolvable:$true] %s206
          %209 = dma.hbm_to_vmem [thread:$0]  %s204, 128, %s207, %s195
        $region24: #{tpu_custom_call.1} parent=15 // pred_fallthru
          _
      $region16: #{tpu_custom_call.1} parent=5 // pred_fallthru
        _
      %p210 = scmp.le.s32.totalorder 1, %s22
      %p211 = scmp.lt.s32.totalorder %s22, 9
      %p212 = pnand %p210, %p211
      %p213 = pneg %p212
      // Predicated region
      $region25: #{tpu_custom_call.1} parent=5 // pred_check
        _
      $region26: #{tpu_custom_call.1} parent=5 // pred_check_branch
        %215 = sbr.rel (%p212) target = $region28
      $region27: #{tpu_custom_call.1} parent=5 // pred_region
        %s216 = ssub.s32 %s22, 1
        %s217 = sand.u32 %s58, 1
        %s218 = scalar_lea.sflag [#allocation5], %s217
        %s219 = sand.u32 %s58, 1
        %s220 = smul.addr %s219, 8
        %s221 = scalar_lea.vmem [#allocation4], %s220
        // Predicated region
        $region29: #{tpu_custom_call.1} parent=27 // pred_check
          %p222 = pneg %p71
        $region30: #{tpu_custom_call.1} parent=27 // pred_check_branch
          %224 = sbr.rel (%p222) target = $region32
        $region31: #{tpu_custom_call.1} parent=27 // pred_region
          %225 = dma.done %s218, 128
        $region32: #{tpu_custom_call.1} parent=27 // pred_fallthru
          _
        %s226 = sand.u32 %s86, 1
        %s227 = scalar_lea.sflag [#allocation8], %s226
        %s228 = sand.u32 %s86, 1
        %s229 = smul.addr %s228, 8
        %s230 = scalar_lea.vmem [#allocation7], %s229
        // Predicated region
        $region33: #{tpu_custom_call.1} parent=27 // pred_check
          %p231 = pneg %p99
        $region34: #{tpu_custom_call.1} parent=27 // pred_check_branch
          %233 = sbr.rel (%p231) target = $region36
        $region35: #{tpu_custom_call.1} parent=27 // pred_region
          %234 = dma.done %s227, 128
        $region36: #{tpu_custom_call.1} parent=27 // pred_fallthru
          _
        %s235 = sand.u32 %s58, 1
        %s236 = scalar_lea.sflag [#allocation5], %s235
        %s237 = sand.u32 %s58, 1
        %s238 = smul.addr %s237, 8
        %s239 = scalar_lea.vmem [#allocation4], %s238
        %p240 = pneg %p71
        %p241 = pneg %p68
        %s242 = sand.u32 %s86, 1
        %s243 = scalar_lea.sflag [#allocation8], %s242
        %s244 = sand.u32 %s86, 1
        %s245 = smul.addr %s244, 8
        %s246 = scalar_lea.vmem [#allocation7], %s245
        %p247 = pneg %p99
        %p248 = pneg %p96
        %p249 = pneg %p125
        %p250 = pneg %p122
        %s251 = sand.u32 %s112, 1
        %s252 = scalar_lea.sflag [#allocation6], %s251
        %s253 = sand.u32 %s112, 1
        %s254 = smul.addr %s253, 8
        %s255 = scalar_lea.vmem [#allocation9], %s254
        %p256 = pneg %p151
        %p257 = pneg %p148
        %s258 = sand.u32 %s138, 1
        %s259 = scalar_lea.sflag [#allocation11], %s258
        %s260 = sand.u32 %s138, 1
        %s261 = smul.addr %s260, 8
        %s262 = scalar_lea.vmem [#allocation10], %s261
        %p263 = scmp.eq.s32.totalorder %s33, 0
        %p264 = scmp.eq.s32.totalorder %s34, 0
        %p265 = pnand %p263, %p264
        %p266 = pneg %p265
        // Predicated region
        $region37: #{tpu_custom_call.1} parent=27 // pred_check
          _
        $region38: #{tpu_custom_call.1} parent=27 // pred_check_branch
          %268 = sbr.rel (%p265) target = $region40
        $region39: #{tpu_custom_call.1} parent=27 // pred_region
          %269 = vst [vmem:[%s255] sm:$0xff] 0.0
          %270 = vst [vmem:[%s262] sm:$0xff] 0.0
        $region40: #{tpu_custom_call.1} parent=27 // pred_fallthru
          _
        // Predicated region
        $region41: #{tpu_custom_call.1} parent=27 // pred_check
          %p271 = pneg %p264
        $region42: #{tpu_custom_call.1} parent=27 // pred_check_branch
          %273 = sbr.rel (%p271) target = $region44
        $region43: #{tpu_custom_call.1} parent=27 // pred_region
          %v274 = vld [vmem:[%s230] sm:$0xff]
          %vm275 = vcmp.eq.f32.partialorder %v274, 1.0
          %v276 = vsel %vm275, 1, 0
          %v277 = vcvt.s32.f32 %v276
          %vm278 = vcmp.lt.f32.partialorder %v274, 1.0
          %v279 = vsel %vm278, 1, 0
          %v280 = vcvt.s32.f32 %v279
          %v281 = vsub.f32 1.0, %v274
          %v282 = vmul.f32 %v281, %v281
          %v283 = vmul.f32 %v282, %v282
          %v284 = vmul.f32 %v280, %v283
          %285 = vst [vmem:[#allocation2] sm:$0xff] %v277
          %286 = vst [vmem:[#allocation3] sm:$0xff] %v284
          %v287 = vld [vmem:[%s262] sm:$0xff]
          %v288 = vadd.f32 %v277, 0.0
          %v289 = vadd.f32 %v287, %v288
          %290 = vst [vmem:[%s262] sm:$0xff] %v289
        $region44: #{tpu_custom_call.1} parent=27 // pred_fallthru
          _
        %v291 = vld [vmem:[%s221] sm:$0xff]
        %v292 = vld [vmem:[#allocation2] sm:$0xff]
        %vm293 = vcmp.eq.f32.partialorder %v292, 1.0
        %v294 = vld [vmem:[#allocation3] sm:$0xff]
        %vm295 = vcmp.gt.f32.partialorder %v291, 0.5
        %v296 = vsel %vm295, 2.0, 1.0
        %v297 = vmax.f32 %v291, 0.0001
        %v298 = vmin.f32 %v297, 0.9999
        %v299 = vsub.f32 1.0, %v298
        %v300 = vsel %vm293, %v298, %v299
        %v301 = vlog2.pop %v300
        %v302 = vmul.f32 %v301, 0.6931472
        %v303 = vmul.f32 %v299, %v299
        %v304 = vmul.f32 %v298, %v298
        %v305 = vmul.f32 %v304, %v294
        %v306 = vsel %vm293, %v303, %v305
        %v307 = vld [vmem:[%s255] sm:$0xff]
        %v308 = vmul.f32 %v302, %v296
        %v309 = vmul.f32 %v308, %v306
        %v310 = vadd.f32 %v309, 0.0
        %v311 = vadd.f32 %v307, %v310
        %312 = vst [vmem:[%s255] sm:$0xff] %v311
        %s313 = sand.u32 %s112, 1
        %s314 = scalar_lea.sflag [#allocation6], %s313
        %s315 = sand.u32 %s112, 1
        %s316 = smul.addr %s315, 8
        %s317 = scalar_lea.vmem [#allocation9], %s316
        %s318 = sand.u32 %s138, 1
        %s319 = scalar_lea.sflag [#allocation11], %s318
        %s320 = sand.u32 %s138, 1
        %s321 = smul.addr %s320, 8
        %s322 = scalar_lea.vmem [#allocation10], %s321
        // Predicated region
        $region45: #{tpu_custom_call.1} parent=27 // pred_check
          %p323 = pneg %p122
        $region46: #{tpu_custom_call.1} parent=27 // pred_check_branch
          %325 = sbr.rel (%p323) target = $region48
        $region47: #{tpu_custom_call.1} parent=27 // pred_region
          %s327 = ssub.s32 128, 128
          %328 = vsyncadd %s314, %s327
          %s329 = smul.addr %s32, 128
          %s330 = scalar_lea.hbm %s2, %s329
          %s332 = sshll.u32 %s317, 4
          %s333 = int_to_ptr.vmem [resolvable:$true] %s332
          %335 = dma.vmem_to_hbm [thread:$0]  %s333, 128, %s330, %s314
        $region48: #{tpu_custom_call.1} parent=27 // pred_fallthru
          _
        // Predicated region
        $region49: #{tpu_custom_call.1} parent=27 // pred_check
          %p336 = pneg %p148
        $region50: #{tpu_custom_call.1} parent=27 // pred_check_branch
          %338 = sbr.rel (%p336) target = $region52
        $region51: #{tpu_custom_call.1} parent=27 // pred_region
          %s340 = ssub.s32 128, 128
          %341 = vsyncadd %s319, %s340
          %s342 = smul.addr %s32, 128
          %s343 = scalar_lea.hbm %s3, %s342
          %s345 = sshll.u32 %s322, 4
          %s346 = int_to_ptr.vmem [resolvable:$true] %s345
          %348 = dma.vmem_to_hbm [thread:$0]  %s346, 128, %s343, %s319
        $region52: #{tpu_custom_call.1} parent=27 // pred_fallthru
          _
      $region28: #{tpu_custom_call.1} parent=5 // pred_fallthru
        _
      %p349 = scmp.le.s32.totalorder 2, %s22
      // Predicated region
      $region53: #{tpu_custom_call.1} parent=5 // pred_check
        %p350 = pneg %p349
      $region54: #{tpu_custom_call.1} parent=5 // pred_check_branch
        %352 = sbr.rel (%p350) target = $region56
      $region55: #{tpu_custom_call.1} parent=5 // pred_region
        %s353 = ssub.s32 %s22, 2
        // Predicated region
        $region57: #{tpu_custom_call.1} parent=55 // pred_check
          %p354 = pneg %p128
        $region58: #{tpu_custom_call.1} parent=55 // pred_check_branch
          %356 = sbr.rel (%p354) target = $region60
        $region59: #{tpu_custom_call.1} parent=55 // pred_region
          %s357 = sand.u32 %s113, 1
          %s358 = scalar_lea.sflag [#allocation6], %s357
          %s359 = sand.u32 %s113, 1
          %s360 = smul.addr %s359, 8
          %s361 = scalar_lea.vmem [#allocation9], %s360
          %362 = dma.done %s358, 128
        $region60: #{tpu_custom_call.1} parent=55 // pred_fallthru
          _
        // Predicated region
        $region61: #{tpu_custom_call.1} parent=55 // pred_check
          %p363 = pneg %p154
        $region62: #{tpu_custom_call.1} parent=55 // pred_check_branch
          %365 = sbr.rel (%p363) target = $region64
        $region63: #{tpu_custom_call.1} parent=55 // pred_region
          %s366 = sand.u32 %s139, 1
          %s367 = scalar_lea.sflag [#allocation11], %s366
          %s368 = sand.u32 %s139, 1
          %s369 = smul.addr %s368, 8
          %s370 = scalar_lea.vmem [#allocation10], %s369
          %371 = dma.done %s367, 128
        $region64: #{tpu_custom_call.1} parent=55 // pred_fallthru
          _
      $region56: #{tpu_custom_call.1} parent=5 // pred_fallthru
        _
    $region6: #{tpu_custom_call.1} parent=1 // loop_footer
      %s26 = sadd.s32 1, %s22
    $region7: #{tpu_custom_call.1} parent=1 // loop_footer_branch
      %21 = sbr.rel target = $region3
    $region8: #{tpu_custom_call.1} parent=1 // loop_exit
      _
    %372 = vsyncpa [#allocation5], 1
    %s373 = scalar_lea.sflag [#allocation5], 1
    %374 = vsyncpa %s373, 1
    %375 = vsyncpa [#allocation8], 1
    %s376 = scalar_lea.sflag [#allocation8], 1
    %377 = vsyncpa %s376, 1
    %378 = vsyncpa [#allocation6], 1
    %s379 = scalar_lea.sflag [#allocation6], 1
    %380 = vsyncpa %s379, 1
    %381 = vsyncpa [#allocation11], 1
    %s382 = scalar_lea.sflag [#allocation11], 1
    %383 = vsyncpa %s382, 1

</llo_original>
